<compile_context>
chip_gen: v7x
topology: tpu7x:2x2x1
jax: 0.10.0
libtpu: 0.0.40
codegen_flags: <defaults>
</compile_context>

<pallas_src>
import jax
import jax.numpy as jnp
from jax.experimental import pallas as pl
from jax.experimental.pallas import tpu as pltpu


def _round_up(n, m):
    return ((n + m - 1) // m) * m


def _ac_shared_kernel(xy_ref, w_in_ref, b_in_ref,
                      w_hid_ref, b_hid_ref,
                      w_head_ref, b_head_ref,
                      out_ref):
    cdt = w_in_ref.dtype  # MXU operand dtype (f32 or bf16); accumulation is f32.

    # Layer 1: fused fc_shared0 / fc_shared1 (block-diagonal weight) + ReLU.
    h = jnp.dot(xy_ref[...], w_in_ref[...], preferred_element_type=jnp.float32)
    h = jnp.maximum(h + b_in_ref[...], 0.0)                 # (Bt, hid+12), f32

    # Layer 2: fused critic_hidden | actor_hidden + ReLU.
    h2 = jnp.dot(h.astype(cdt), w_hid_ref[...],
                 preferred_element_type=jnp.float32)
    h2 = jnp.maximum(h2 + b_hid_ref[...], 0.0)              # (Bt, 2*hid) = [hc|ha]

    # Layer 3: fused critic / actor heads (block-diagonal head weight).
    out = jnp.dot(h2.astype(cdt), w_head_ref[...],
                  preferred_element_type=jnp.float32) + b_head_ref[...]
    crit = out[:, 0:1]                                       # critic (no activation)
    logits = out[:, 1:]                                      # actor logits

    # softmax(dim=1) in f32; reciprocal on the EUP.
    m = jnp.max(logits, axis=-1, keepdims=True)
    e = jnp.exp(logits - m)
    probs = e * pl.reciprocal(jnp.sum(e, axis=-1, keepdims=True), approx=True)

    out_ref[...] = jnp.concatenate([crit, probs], axis=1).astype(out_ref.dtype)


def ac_shared_forward(x, y, fused, *, compute_dtype=jnp.bfloat16, b_tile=None):
    """x: (B, in_size), y: (B, 2) -> (actor_probs (B, action_size), critic (B, 1))."""
    B, in_size = x.shape
    fused_in = in_size + 2
    act_sz = fused["w_head"].shape[1] - 1
    assert fused["w_in"].shape[0] == fused_in

    # Concatenate inputs in the wrapper -> one lane-contiguous first-layer operand.
    xy = jnp.concatenate([x, y], axis=1).astype(compute_dtype)

    # Batch tiling: sublane dim multiple of 8; pad batch to a whole number of tiles.
    if b_tile is None:
        b_tile = min(512, _round_up(B, 8))
    b_tile = max(8, _round_up(int(b_tile), 8))
    grid = pl.cdiv(B, b_tile)
    b_pad = grid * b_tile
    if b_pad != B:
        xy = jnp.pad(xy, ((0, b_pad - B), (0, 0)))

    cast = lambda a: a.astype(compute_dtype)
    w_in, b_in = cast(fused["w_in"]), fused["b_in"]
    w_hid, b_hid = cast(fused["w_hid"]), fused["b_hid"]
    w_head, b_head = cast(fused["w_head"]), fused["b_head"]

    # Weights/biases: full-array blocks, constant index -> DMA'd once, stay resident.
    def full(a):
        return pl.BlockSpec(a.shape, lambda i: (0, 0))

    def batched(feat):
        return pl.BlockSpec((b_tile, feat), lambda i: (i, 0))

    out = pl.pallas_call(
        _ac_shared_kernel,
        out_shape=jax.ShapeDtypeStruct((b_pad, 1 + act_sz), jnp.float32),
        grid=(grid,),
        in_specs=[batched(fused_in),
                  full(w_in), full(b_in),
                  full(w_hid), full(b_hid),
                  full(w_head), full(b_head)],
        out_specs=batched(1 + act_sz),
        compiler_params=pltpu.CompilerParams(
            dimension_semantics=("parallel",)),
    )(xy, w_in, b_in, w_hid, b_hid, w_head, b_head)

    actor = out[:B, 1:]
    critic = out[:B, :1]
    return actor, critic


def init_params(key, in_size, action_size, hidden_size):
    """Deterministic init mimicking nn.Linear's U(-1/sqrt(fan_in), 1/sqrt(fan_in)).

    Weights stored as (in_features, out_features) (i.e. PyTorch W transposed)."""
    def linear(k, fan_in, fan_out):
        kw, kb = jax.random.split(k)
        bound = 1.0 / jnp.sqrt(jnp.float32(fan_in))
        w = jax.random.uniform(kw, (fan_in, fan_out), jnp.float32, -bound, bound)
        b = jax.random.uniform(kb, (1, fan_out), jnp.float32, -bound, bound)
        return w, b

    ks = jax.random.split(key, 6)
    w0, b0 = linear(ks[0], in_size, hidden_size)            # fc_shared0
    w1, b1 = linear(ks[1], 2, 12)                           # fc_shared1
    wc, bc = linear(ks[2], hidden_size + 12, hidden_size)   # critic_hidden
    wa, ba = linear(ks[3], hidden_size + 12, hidden_size)   # actor_hidden
    wcr, bcr = linear(ks[4], hidden_size, 1)                # critic
    wac, bac = linear(ks[5], hidden_size, action_size)      # actor
    return {"w0": w0, "b0": b0, "w1": w1, "b1": b1,
            "wc": wc, "bc": bc, "wa": wa, "ba": ba,
            "w_crit": wcr, "b_crit": bcr, "w_act": wac, "b_act": bac}


def fuse_params(p):
    """Build the fused kernel weights from the per-layer params (exact math)."""
    in_size, hid = p["w0"].shape
    act_sz = p["w_act"].shape[1]

    # Layer 1: block-diagonal [[W0, 0], [0, W1]].
    w_in = jnp.zeros((in_size + 2, hid + 12), jnp.float32)
    w_in = w_in.at[:in_size, :hid].set(p["w0"])
    w_in = w_in.at[in_size:, hid:].set(p["w1"])
    b_in = jnp.concatenate([p["b0"], p["b1"]], axis=1)

    # Layer 2: [critic_hidden | actor_hidden] concatenated along out-features.
    w_hid = jnp.concatenate([p["wc"], p["wa"]], axis=1)
    b_hid = jnp.concatenate([p["bc"], p["ba"]], axis=1)

    # Layer 3: block-diagonal heads; col 0 = critic, cols 1: = actor.
    w_head = jnp.zeros((2 * hid, 1 + act_sz), jnp.float32)
    w_head = w_head.at[:hid, 0:1].set(p["w_crit"])
    w_head = w_head.at[hid:, 1:].set(p["w_act"])
    b_head = jnp.concatenate([p["b_crit"], p["b_act"]], axis=1)

    return {"w_in": w_in, "b_in": b_in,
            "w_hid": w_hid, "b_hid": b_hid,
            "w_head": w_head, "b_head": b_head}


def _reference_forward(x, y, p):
    """Pure-JAX f32 reference, same math as AC_shared.forward."""
    hx = jax.nn.relu(x @ p["w0"] + p["b0"])
    hy = jax.nn.relu(y @ p["w1"] + p["b1"])
    h = jnp.concatenate([hx, hy], axis=1)
    hc = jax.nn.relu(h @ p["wc"] + p["bc"])
    ha = jax.nn.relu(h @ p["wa"] + p["ba"])
    critic = hc @ p["w_crit"] + p["b_crit"]
    actor = jax.nn.softmax(ha @ p["w_act"] + p["b_act"], axis=1)
    return actor, critic


if __name__ == "__main__":
    # TODO(synk): only forward() is implemented; update()/optimizer/get_action()
    # (training utilities) are host-side PyTorch logic with no Pallas equivalent.
    B, IN_SZ, HID_SZ, ACT_SZ = 10, 32, 32, 4

    key = jax.random.PRNGKey(0)
    kx, ky, kp = jax.random.split(key, 3)
    x = jax.random.normal(kx, (B, IN_SZ), jnp.float32)
    y = jax.random.normal(ky, (B, 2), jnp.float32)
    params = init_params(kp, IN_SZ, ACT_SZ, HID_SZ)
    fused = fuse_params(params)

    ref_actor, ref_critic = _reference_forward(x, y, params)

    # --- f32 MXU-operand path (validation) ---
    a32, c32 = ac_shared_forward(x, y, fused, compute_dtype=jnp.float32)
    (a32, c32) = jax.block_until_ready((a32, c32))
    assert a32.shape == (B, ACT_SZ) and c32.shape == (B, 1)
    assert jnp.allclose(jnp.sum(a32, axis=1), 1.0, atol=1e-2)
    assert jnp.allclose(a32, ref_actor, atol=2e-2, rtol=2e-2)
    assert jnp.allclose(c32, ref_critic, atol=2e-2, rtol=2e-2)

    # --- bf16 MXU-operand path (performance config), looser tolerance ---
    abf, cbf = ac_shared_forward(x, y, fused, compute_dtype=jnp.bfloat16)
    (abf, cbf) = jax.block_until_ready((abf, cbf))
    assert jnp.allclose(abf, ref_actor, atol=6e-2, rtol=6e-2)
    assert jnp.allclose(cbf, ref_critic, atol=6e-2, rtol=6e-2)

    # --- multi-step grid + batch-padding check (exercises the pipeline) ---
    B2 = 40
    x2 = jax.random.normal(kx, (B2, IN_SZ), jnp.float32)
    y2 = jax.random.normal(ky, (B2, 2), jnp.float32)
    a2, c2 = ac_shared_forward(x2, y2, fused, compute_dtype=jnp.float32, b_tile=16)
    (a2, c2) = jax.block_until_ready((a2, c2))
    ra2, rc2 = _reference_forward(x2, y2, params)
    assert a2.shape == (B2, ACT_SZ) and c2.shape == (B2, 1)
    assert jnp.allclose(a2, ra2, atol=2e-2, rtol=2e-2)
    assert jnp.allclose(c2, rc2, atol=2e-2, rtol=2e-2)

    print("KERNEL_OK")
</pallas_src>

<mosaic_0001>
module attributes {stable_mosaic.version = 11 : i64} {
  func.func @_ac_shared_kernel(%arg0: i32, %arg1: memref<16x34xf32, #tpu.memory_space<vmem>>, %arg2: memref<34x44xf32, #tpu.memory_space<vmem>>, %arg3: memref<1x44xf32, #tpu.memory_space<vmem>>, %arg4: memref<44x64xf32, #tpu.memory_space<vmem>>, %arg5: memref<1x64xf32, #tpu.memory_space<vmem>>, %arg6: memref<64x5xf32, #tpu.memory_space<vmem>>, %arg7: memref<1x5xf32, #tpu.memory_space<vmem>>, %arg8: memref<16x5xf32, #tpu.memory_space<vmem>>) attributes {dimension_semantics = [#tpu.dimension_semantics<parallel>], iteration_bounds = array<i64: 1>, scalar_prefetch = 0 : i64, scratch_operands = 0 : i64, tpu.core_type = #tpu.core_type<tc>, window_params = [{transform_indices = @transform_0, window_bounds = array<i64: 16, 34>}, {pipeline_mode = #tpu.pipeline_mode<synchronous>, transform_indices = @transform_1, window_bounds = array<i64: 34, 44>}, {pipeline_mode = #tpu.pipeline_mode<synchronous>, transform_indices = @transform_2, window_bounds = array<i64: 1, 44>}, {pipeline_mode = #tpu.pipeline_mode<synchronous>, transform_indices = @transform_3, window_bounds = array<i64: 44, 64>}, {pipeline_mode = #tpu.pipeline_mode<synchronous>, transform_indices = @transform_4, window_bounds = array<i64: 1, 64>}, {pipeline_mode = #tpu.pipeline_mode<synchronous>, transform_indices = @transform_5, window_bounds = array<i64: 64, 5>}, {pipeline_mode = #tpu.pipeline_mode<synchronous>, transform_indices = @transform_6, window_bounds = array<i64: 1, 5>}, {transform_indices = @transform_7, window_bounds = array<i64: 16, 5>}]} {
    %c0 = arith.constant 0 : index
    %c0_0 = arith.constant 0 : index
    %0 = vector.load %arg1[%c0, %c0_0] : memref<16x34xf32, #tpu.memory_space<vmem>>, vector<16x34xf32>
    %c0_1 = arith.constant 0 : index
    %c0_2 = arith.constant 0 : index
    %1 = vector.load %arg2[%c0_1, %c0_2] : memref<34x44xf32, #tpu.memory_space<vmem>>, vector<34x44xf32>
    %cst = arith.constant dense<0.000000e+00> : vector<16x44xf32>
    %2 = tpu.matmul %0, %1, %cst {dimension_numbers = #tpu.dot_dimension_numbers<[1], [0], [0], [1], [0, 0, 1, 1], [], []>} : vector<16x34xf32>, vector<34x44xf32>, vector<16x44xf32> -> vector<16x44xf32>
    %c0_3 = arith.constant 0 : index
    %c0_4 = arith.constant 0 : index
    %3 = vector.load %arg3[%c0_3, %c0_4] : memref<1x44xf32, #tpu.memory_space<vmem>>, vector<1x44xf32>
    %4 = vector.broadcast %3 : vector<1x44xf32> to vector<16x44xf32>
    %5 = arith.addf %2, %4 : vector<16x44xf32>
    %cst_5 = arith.constant 0.000000e+00 : f32
    %6 = vector.broadcast %cst_5 : f32 to vector<16x44xf32>
    %7 = arith.maximumf %5, %6 : vector<16x44xf32>
    %c0_6 = arith.constant 0 : index
    %c0_7 = arith.constant 0 : index
    %8 = vector.load %arg4[%c0_6, %c0_7] : memref<44x64xf32, #tpu.memory_space<vmem>>, vector<44x64xf32>
    %cst_8 = arith.constant dense<0.000000e+00> : vector<16x64xf32>
    %9 = tpu.matmul %7, %8, %cst_8 {dimension_numbers = #tpu.dot_dimension_numbers<[1], [0], [0], [1], [0, 0, 1, 1], [], []>} : vector<16x44xf32>, vector<44x64xf32>, vector<16x64xf32> -> vector<16x64xf32>
    %c0_9 = arith.constant 0 : index
    %c0_10 = arith.constant 0 : index
    %10 = vector.load %arg5[%c0_9, %c0_10] : memref<1x64xf32, #tpu.memory_space<vmem>>, vector<1x64xf32>
    %11 = vector.broadcast %10 : vector<1x64xf32> to vector<16x64xf32>
    %12 = arith.addf %9, %11 : vector<16x64xf32>
    %cst_11 = arith.constant 0.000000e+00 : f32
    %13 = vector.broadcast %cst_11 : f32 to vector<16x64xf32>
    %14 = arith.maximumf %12, %13 : vector<16x64xf32>
    %c0_12 = arith.constant 0 : index
    %c0_13 = arith.constant 0 : index
    %15 = vector.load %arg6[%c0_12, %c0_13] : memref<64x5xf32, #tpu.memory_space<vmem>>, vector<64x5xf32>
    %cst_14 = arith.constant dense<0.000000e+00> : vector<16x5xf32>
    %16 = tpu.matmul %14, %15, %cst_14 {dimension_numbers = #tpu.dot_dimension_numbers<[1], [0], [0], [1], [0, 0, 1, 1], [], []>} : vector<16x64xf32>, vector<64x5xf32>, vector<16x5xf32> -> vector<16x5xf32>
    %c0_15 = arith.constant 0 : index
    %c0_16 = arith.constant 0 : index
    %17 = vector.load %arg7[%c0_15, %c0_16] : memref<1x5xf32, #tpu.memory_space<vmem>>, vector<1x5xf32>
    %18 = vector.broadcast %17 : vector<1x5xf32> to vector<16x5xf32>
    %19 = arith.addf %16, %18 : vector<16x5xf32>
    %20 = vector.extract_strided_slice %19 {offsets = [0, 0], sizes = [16, 1], strides = [1, 1]} : vector<16x5xf32> to vector<16x1xf32>
    %21 = vector.extract_strided_slice %19 {offsets = [0, 1], sizes = [16, 4], strides = [1, 1]} : vector<16x5xf32> to vector<16x4xf32>
    %cst_17 = arith.constant dense<0xFF800000> : vector<16xf32>
    %22 = vector.multi_reduction <maximumf>, %21, %cst_17 [1] : vector<16x4xf32> to vector<16xf32>
    %23 = vector.shape_cast %22 : vector<16xf32> to vector<16x1xf32>
    %24 = vector.broadcast %23 : vector<16x1xf32> to vector<16x4xf32>
    %25 = arith.subf %21, %24 : vector<16x4xf32>
    %26 = math.exp %25 : vector<16x4xf32>
    %cst_18 = arith.constant dense<0.000000e+00> : vector<16xf32>
    %27 = vector.multi_reduction <add>, %26, %cst_18 [1] : vector<16x4xf32> to vector<16xf32>
    %28 = vector.shape_cast %27 : vector<16xf32> to vector<16x1xf32>
    %29 = tpu.reciprocal %28 {approx = true} : vector<16x1xf32> -> vector<16x1xf32>
    %30 = vector.broadcast %29 : vector<16x1xf32> to vector<16x4xf32>
    %31 = arith.mulf %26, %30 : vector<16x4xf32>
    %32 = tpu.concatenate %20, %31 in 1 : vector<16x1xf32>, vector<16x4xf32> -> vector<16x5xf32>
    %c0_19 = arith.constant 0 : index
    %c0_20 = arith.constant 0 : index
    %33 = vector.load %arg8[%c0_19, %c0_20] : memref<16x5xf32, #tpu.memory_space<vmem>>, vector<16x5xf32>
    tpu.vector_store %arg8[%c0_19, %c0_20], %32 {strides = array<i32>} : memref<16x5xf32, #tpu.memory_space<vmem>>, vector<16x5xf32>,
    return
  }
  func.func @transform_0(%arg0: i32) -> (i32, i32) {
    %c0_i32 = arith.constant 0 : i32
    %c0_i32_0 = arith.constant 0 : i32
    return %arg0, %c0_i32 : i32, i32
  }
  func.func @transform_1(%arg0: i32) -> (i32, i32) {
    %c0_i32 = arith.constant 0 : i32
    %c0_i32_0 = arith.constant 0 : i32
    %c0_i32_1 = arith.constant 0 : i32
    return %c0_i32, %c0_i32_0 : i32, i32
  }
  func.func @transform_2(%arg0: i32) -> (i32, i32) {
    %c0_i32 = arith.constant 0 : i32
    %c0_i32_0 = arith.constant 0 : i32
    %c0_i32_1 = arith.constant 0 : i32
    return %c0_i32, %c0_i32_0 : i32, i32
  }
  func.func @transform_3(%arg0: i32) -> (i32, i32) {
    %c0_i32 = arith.constant 0 : i32
    %c0_i32_0 = arith.constant 0 : i32
    %c0_i32_1 = arith.constant 0 : i32
    return %c0_i32, %c0_i32_0 : i32, i32
  }
  func.func @transform_4(%arg0: i32) -> (i32, i32) {
    %c0_i32 = arith.constant 0 : i32
    %c0_i32_0 = arith.constant 0 : i32
    %c0_i32_1 = arith.constant 0 : i32
    return %c0_i32, %c0_i32_0 : i32, i32
  }
  func.func @transform_5(%arg0: i32) -> (i32, i32) {
    %c0_i32 = arith.constant 0 : i32
    %c0_i32_0 = arith.constant 0 : i32
    %c0_i32_1 = arith.constant 0 : i32
    return %c0_i32, %c0_i32_0 : i32, i32
  }
  func.func @transform_6(%arg0: i32) -> (i32, i32) {
    %c0_i32 = arith.constant 0 : i32
    %c0_i32_0 = arith.constant 0 : i32
    %c0_i32_1 = arith.constant 0 : i32
    return %c0_i32, %c0_i32_0 : i32, i32
  }
  func.func @transform_7(%arg0: i32) -> (i32, i32) {
    %c0_i32 = arith.constant 0 : i32
    %c0_i32_0 = arith.constant 0 : i32
    return %arg0, %c0_i32 : i32, i32
  }
}

</mosaic_0001>

<llo_original>
// kernel: tpu_custom_call.1
$region0: #{tpu_custom_call.1}
  #allocation0 [shape = 'u32[]', space=smem, size = 0x4, offset = 0x4, fixed_abs, tag = 'smem constant byte address 0x4 - core index']
  #allocation1 [shape = 'u32[144,128]{1,0:T(1,128)}', space=vmem, size = 0x12000, scoped, tag = 'internal scratch']
  %s0 = inlined_call_operand.vmem [shape: f32[16,34], index: 0, kind: input, shape index: {}]
  %s1 = inlined_call_operand.hbm [shape: f32[34,44], index: 1, kind: input, shape index: {}]
  %s2 = inlined_call_operand.vmem [shape: f32[1,44], index: 2, kind: input, shape index: {}]
  %s3 = inlined_call_operand.vmem [shape: f32[44,64], index: 3, kind: input, shape index: {}]
  %s4 = inlined_call_operand.vmem [shape: f32[1,64], index: 4, kind: input, shape index: {}]
  %s5 = inlined_call_operand.vmem [shape: f32[64,5], index: 5, kind: input, shape index: {}]
  %s6 = inlined_call_operand.vmem [shape: f32[1,5], index: 6, kind: input, shape index: {}]
  %s7 = inlined_call_operand.vmem [shape: f32[16,5], index: 7, kind: output, shape index: {}]
  %s8 = sld [smem:[#allocation0]]
  $region42: #{tpu_custom_call.1} parent=0
    _
  %s10 = ssub.s32 1, %s8
  %s11 = scalar_select 0, %s10, %s8
  $region1: #{tpu_custom_call.1} parent=0
    #allocation2 [shape = 'u8[20480]{0}', space=vmem, size = 0x5000, scoped, tag = 'input window, operand 1, single buffered']
    #allocation3 [shape = 's32[1]{0}', space=sflag, size = 0x4, scoped, tag = 'scoped memory for tpu_custom_call.1']
    %12 = vsyncpa [#allocation3], 0
    // Predicated region
    $region2: #{tpu_custom_call.1} parent=1 // pred_check
      _
    $region3: #{tpu_custom_call.1} parent=1 // pred_check_branch
      %14 = sbr.rel (0) target = $region5
    $region4: #{tpu_custom_call.1} parent=1 // pred_region
      _
    $region5: #{tpu_custom_call.1} parent=1 // pred_fallthru
      _
    // Predicated region
    $region6: #{tpu_custom_call.1} parent=1 // pred_check
      _
    $region7: #{tpu_custom_call.1} parent=1 // pred_check_branch
      %16 = sbr.rel (0) target = $region9
    $region8: #{tpu_custom_call.1} parent=1 // pred_region
      %s18 = ssub.s32 640, 640
      %19 = vsyncadd [#allocation3], %s18
      %s20 = sshll.u32 [#allocation2], 4
      %s21 = int_to_ptr.vmem [resolvable:$true] %s20
      %26 = dma.hbm_to_vmem [thread:$0]  %s1, 640, %s21, [#allocation3], 128, 128, 8
    $region9: #{tpu_custom_call.1} parent=1 // pred_fallthru
      _
    // Predicated region
    $region10: #{tpu_custom_call.1} parent=1 // pred_check
      _
    $region11: #{tpu_custom_call.1} parent=1 // pred_check_branch
      %28 = sbr.rel (0) target = $region13
    $region12: #{tpu_custom_call.1} parent=1 // pred_region
      _
    $region13: #{tpu_custom_call.1} parent=1 // pred_fallthru
      _
    // Predicated region
    $region14: #{tpu_custom_call.1} parent=1 // pred_check
      _
    $region15: #{tpu_custom_call.1} parent=1 // pred_check_branch
      %30 = sbr.rel (0) target = $region17
    $region16: #{tpu_custom_call.1} parent=1 // pred_region
      _
    $region17: #{tpu_custom_call.1} parent=1 // pred_fallthru
      _
    // Predicated region
    $region18: #{tpu_custom_call.1} parent=1 // pred_check
      _
    $region19: #{tpu_custom_call.1} parent=1 // pred_check_branch
      %32 = sbr.rel (0) target = $region21
    $region20: #{tpu_custom_call.1} parent=1 // pred_region
      _
    $region21: #{tpu_custom_call.1} parent=1 // pred_fallthru
      _
    // Predicated region
    $region22: #{tpu_custom_call.1} parent=1 // pred_check
      _
    $region23: #{tpu_custom_call.1} parent=1 // pred_check_branch
      %34 = sbr.rel (0) target = $region25
    $region24: #{tpu_custom_call.1} parent=1 // pred_region
      _
    $region25: #{tpu_custom_call.1} parent=1 // pred_fallthru
      _
    // Predicated region
    $region26: #{tpu_custom_call.1} parent=1 // pred_check
      _
    $region27: #{tpu_custom_call.1} parent=1 // pred_check_branch
      %36 = sbr.rel (0) target = $region29
    $region28: #{tpu_custom_call.1} parent=1 // pred_region
      _
    $region29: #{tpu_custom_call.1} parent=1 // pred_fallthru
      _
    // Predicated region
    $region30: #{tpu_custom_call.1} parent=1 // pred_check
      _
    $region31: #{tpu_custom_call.1} parent=1 // pred_check_branch
      %38 = sbr.rel (0) target = $region33
    $region32: #{tpu_custom_call.1} parent=1 // pred_region
      %39 = dma.done [#allocation3], 640
    $region33: #{tpu_custom_call.1} parent=1 // pred_fallthru
      _
    %v40 = vld [vmem:[%s0] sm:$0xff]
    %v41 = vld [vmem:[%s0 + $0x8] sm:$0xff]
    %v42 = vld [vmem:[#allocation2] sm:$0xff]
    %v43 = vld [vmem:[#allocation2 + $0x8] sm:$0xff]
    %v44 = vld [vmem:[#allocation2 + $0x10] sm:$0xff]
    %v45 = vld [vmem:[#allocation2 + $0x18] sm:$0xff]
    %v46 = vld [vmem:[#allocation2 + $0x20] sm:$0x3]
    %v47 = vld [vmem:[%s2] sm:$0x1]
    %v49 = vlaneseq
    %v50 = vshrl.u32 %v49, 7
    %v51 = vsub.s32 0, %v50
    %v52 = vrot.slane %v47, %v51
    %vm54 = vcmask 277504
    %v56 = vsel %vm54, %v40, 0
    %v59 = vsel %vm54, %v41, 0
    %vm61 = vcmask 1041408
    %v63 = vsel %vm61, %v46, 0
    %65 = vmatprep.subr.mxu0 0.0
    %66 = vmatpush1.msra.mxu0 %v42
    %67 = vmatprep.subr.mxu0 0.0
    %68 = vmatpush1.msra.mxu0 %v43
    %69 = vmatprep.subr.mxu0 0.0
    %70 = vmatpush1.msra.mxu0 %v44
    %71 = vmatprep.subr.mxu0 0.0
    %72 = vmatpush1.msra.mxu0 %v45
    %73 = vmatprep.subr.mxu0 0.0
    %74 = vmatpush1.msra.mxu0 %v63
    %75 = vmatprep.subr.mxu0 0.0
    %76 = vmatpush1.msra.mxu0 0.0
    %77 = vmatprep.subr.mxu0 0.0
    %78 = vmatpush1.msra.mxu0 0.0
    %79 = vmatprep.subr.mxu0 0.0
    %80 = vmatpush1.msra.mxu0 0.0
    %81 = vmatprep.subr.mxu0 0.0
    %82 = vmatpush1.msra.mxu0 0.0
    %83 = vmatprep.subr.mxu0 0.0
    %84 = vmatpush1.msra.mxu0 0.0
    %85 = vmatprep.subr.mxu0 0.0
    %86 = vmatpush1.msra.mxu0 0.0
    %87 = vmatprep.subr.mxu0 0.0
    %88 = vmatpush1.msra.mxu0 0.0
    %89 = vmatprep.subr.mxu0 0.0
    %90 = vmatpush1.msra.mxu0 0.0
    %91 = vmatprep.subr.mxu0 0.0
    %92 = vmatpush1.msra.mxu0 0.0
    %93 = vmatprep.subr.mxu0 0.0
    %94 = vmatpush1.msra.mxu0 0.0
    %95 = vmatprep.subr.mxu0 0.0
    %96 = vmatpush1.msra.mxu0 0.0
    %97 = vmatprep.subr.mxu0 0.0
    %98 = vmatpush1.msra.mxu0 0.0
    %99 = vmatprep.subr.mxu0 0.0
    %100 = vmatpush1.msra.mxu0 0.0
    %101 = vmatprep.subr.mxu0 0.0
    %102 = vmatpush1.msra.mxu0 0.0
    %103 = vmatprep.subr.mxu0 0.0
    %104 = vmatpush1.msra.mxu0 0.0
    %105 = vmatprep.subr.mxu0 0.0
    %106 = vmatpush1.msra.mxu0 0.0
    %107 = vmatprep.subr.mxu0 0.0
    %108 = vmatpush1.msra.mxu0 0.0
    %109 = vmatprep.subr.mxu0 0.0
    %110 = vmatpush1.msra.mxu0 0.0
    %111 = vmatprep.subr.mxu0 0.0
    %112 = vmatpush1.msra.mxu0 0.0
    %113 = vmatprep.subr.mxu0 0.0
    %114 = vmatpush1.msra.mxu0 0.0
    %115 = vmatprep.subr.mxu0 0.0
    %116 = vmatpush1.msra.mxu0 0.0
    %117 = vmatprep.subr.mxu0 0.0
    %118 = vmatpush1.msra.mxu0 0.0
    %119 = vmatprep.subr.mxu0 0.0
    %120 = vmatpush1.msra.mxu0 0.0
    %121 = vmatprep.subr.mxu0 0.0
    %122 = vmatpush1.msra.mxu0 0.0
    %123 = vmatprep.subr.mxu0 0.0
    %124 = vmatpush1.msra.mxu0 0.0
    %125 = vmatprep.subr.mxu0 0.0
    %126 = vmatpush1.msra.mxu0 0.0
    %127 = vmatprep.subr.mxu0 0.0
    %128 = vmatpush1.msra.mxu0 0.0
    %129 = vmatprep.mubr.f32.mxu0 0.0
    %130 = vmatmul.mubr.f32.gmra.mrb[0].mxu0 %v56
    %v131 = vpop.f32.mrb[0].mxu0
    %v132 = vadd.f32 %v52, %v131
    %v133 = vpop.f32.mrb[0].mxu0
    %134 = vmatprep.mubr.f32.mxu0 0.0
    %135 = vmatmul.mubr.f32.gmra.mrb[0].mxu0 %v59
    %v136 = vpop.f32.mrb[0].mxu0
    %v137 = vadd.f32 %v52, %v136
    %v138 = vpop.f32.mrb[0].mxu0
    %139 = vdwg.mxu0
    %v140 = vmax.f32 %v132, 0.0
    %v141 = vmax.f32 %v137, 0.0
    %v142 = vld [vmem:[%s3] sm:$0xff]
    %v143 = vld [vmem:[%s3 + $0x8] sm:$0xff]
    %v144 = vld [vmem:[%s3 + $0x10] sm:$0xff]
    %v145 = vld [vmem:[%s3 + $0x18] sm:$0xff]
    %v146 = vld [vmem:[%s3 + $0x20] sm:$0xff]
    %v147 = vld [vmem:[%s3 + $0x28] sm:$0xf]
    %v148 = vld [vmem:[%s4] sm:$0x1]
    %v150 = vlaneseq
    %v151 = vshrl.u32 %v150, 7
    %v152 = vsub.s32 0, %v151
    %v153 = vrot.slane %v148, %v152
    %vm155 = vcmask 359424
    %v157 = vsel %vm155, %v140, 0
    %v160 = vsel %vm155, %v141, 0
    %vm162 = vcmask 1043456
    %v164 = vsel %vm162, %v147, 0
    %166 = vmatprep.subr.mxu0 0.0
    %167 = vmatpush1.msra.mxu0 %v142
    %168 = vmatprep.subr.mxu0 0.0
    %169 = vmatpush1.msra.mxu0 %v143
    %170 = vmatprep.subr.mxu0 0.0
    %171 = vmatpush1.msra.mxu0 %v144
    %172 = vmatprep.subr.mxu0 0.0
    %173 = vmatpush1.msra.mxu0 %v145
    %174 = vmatprep.subr.mxu0 0.0
    %175 = vmatpush1.msra.mxu0 %v146
    %176 = vmatprep.subr.mxu0 0.0
    %177 = vmatpush1.msra.mxu0 %v164
    %178 = vmatprep.subr.mxu0 0.0
    %179 = vmatpush1.msra.mxu0 0.0
    %180 = vmatprep.subr.mxu0 0.0
    %181 = vmatpush1.msra.mxu0 0.0
    %182 = vmatprep.subr.mxu0 0.0
    %183 = vmatpush1.msra.mxu0 0.0
    %184 = vmatprep.subr.mxu0 0.0
    %185 = vmatpush1.msra.mxu0 0.0
    %186 = vmatprep.subr.mxu0 0.0
    %187 = vmatpush1.msra.mxu0 0.0
    %188 = vmatprep.subr.mxu0 0.0
    %189 = vmatpush1.msra.mxu0 0.0
    %190 = vmatprep.subr.mxu0 0.0
    %191 = vmatpush1.msra.mxu0 0.0
    %192 = vmatprep.subr.mxu0 0.0
    %193 = vmatpush1.msra.mxu0 0.0
    %194 = vmatprep.subr.mxu0 0.0
    %195 = vmatpush1.msra.mxu0 0.0
    %196 = vmatprep.subr.mxu0 0.0
    %197 = vmatpush1.msra.mxu0 0.0
    %198 = vmatprep.subr.mxu0 0.0
    %199 = vmatpush1.msra.mxu0 0.0
    %200 = vmatprep.subr.mxu0 0.0
    %201 = vmatpush1.msra.mxu0 0.0
    %202 = vmatprep.subr.mxu0 0.0
    %203 = vmatpush1.msra.mxu0 0.0
    %204 = vmatprep.subr.mxu0 0.0
    %205 = vmatpush1.msra.mxu0 0.0
    %206 = vmatprep.subr.mxu0 0.0
    %207 = vmatpush1.msra.mxu0 0.0
    %208 = vmatprep.subr.mxu0 0.0
    %209 = vmatpush1.msra.mxu0 0.0
    %210 = vmatprep.subr.mxu0 0.0
    %211 = vmatpush1.msra.mxu0 0.0
    %212 = vmatprep.subr.mxu0 0.0
    %213 = vmatpush1.msra.mxu0 0.0
    %214 = vmatprep.subr.mxu0 0.0
    %215 = vmatpush1.msra.mxu0 0.0
    %216 = vmatprep.subr.mxu0 0.0
    %217 = vmatpush1.msra.mxu0 0.0
    %218 = vmatprep.subr.mxu0 0.0
    %219 = vmatpush1.msra.mxu0 0.0
    %220 = vmatprep.subr.mxu0 0.0
    %221 = vmatpush1.msra.mxu0 0.0
    %222 = vmatprep.subr.mxu0 0.0
    %223 = vmatpush1.msra.mxu0 0.0
    %224 = vmatprep.subr.mxu0 0.0
    %225 = vmatpush1.msra.mxu0 0.0
    %226 = vmatprep.subr.mxu0 0.0
    %227 = vmatpush1.msra.mxu0 0.0
    %228 = vmatprep.subr.mxu0 0.0
    %229 = vmatpush1.msra.mxu0 0.0
    %230 = vmatprep.mubr.f32.mxu0 0.0
    %231 = vmatmul.mubr.f32.gmra.mrb[0].mxu0 %v157
    %v232 = vpop.f32.mrb[0].mxu0
    %v233 = vadd.f32 %v153, %v232
    %v234 = vpop.f32.mrb[0].mxu0
    %235 = vmatprep.mubr.f32.mxu0 0.0
    %236 = vmatmul.mubr.f32.gmra.mrb[0].mxu0 %v160
    %v237 = vpop.f32.mrb[0].mxu0
    %v238 = vadd.f32 %v153, %v237
    %v239 = vpop.f32.mrb[0].mxu0
    %240 = vdwg.mxu0
    %v241 = vmax.f32 %v233, 0.0
    %v242 = vmax.f32 %v238, 0.0
    %v243 = vld [vmem:[%s5] sm:$0xff]
    %v244 = vld [vmem:[%s5 + $0x8] sm:$0xff]
    %v245 = vld [vmem:[%s5 + $0x10] sm:$0xff]
    %v246 = vld [vmem:[%s5 + $0x18] sm:$0xff]
    %v247 = vld [vmem:[%s5 + $0x20] sm:$0xff]
    %v248 = vld [vmem:[%s5 + $0x28] sm:$0xff]
    %v249 = vld [vmem:[%s5 + $0x30] sm:$0xff]
    %v250 = vld [vmem:[%s5 + $0x38] sm:$0xff]
    %v251 = vld [vmem:[%s6] sm:$0x1]
    %v253 = vlaneseq
    %v254 = vshrl.u32 %v253, 7
    %v255 = vsub.s32 0, %v254
    %v256 = vrot.slane %v251, %v255
    %vm258 = vcmask 523264
    %v260 = vsel %vm258, %v241, 0
    %v263 = vsel %vm258, %v242, 0
    %265 = vmatprep.subr.mxu0 0.0
    %266 = vmatpush1.msra.mxu0 %v243
    %267 = vmatprep.subr.mxu0 0.0
    %268 = vmatpush1.msra.mxu0 %v244
    %269 = vmatprep.subr.mxu0 0.0
    %270 = vmatpush1.msra.mxu0 %v245
    %271 = vmatprep.subr.mxu0 0.0
    %272 = vmatpush1.msra.mxu0 %v246
    %273 = vmatprep.subr.mxu0 0.0
    %274 = vmatpush1.msra.mxu0 %v247
    %275 = vmatprep.subr.mxu0 0.0
    %276 = vmatpush1.msra.mxu0 %v248
    %277 = vmatprep.subr.mxu0 0.0
    %278 = vmatpush1.msra.mxu0 %v249
    %279 = vmatprep.subr.mxu0 0.0
    %280 = vmatpush1.msra.mxu0 %v250
    %281 = vmatprep.subr.mxu0 0.0
    %282 = vmatpush1.msra.mxu0 0.0
    %283 = vmatprep.subr.mxu0 0.0
    %284 = vmatpush1.msra.mxu0 0.0
    %285 = vmatprep.subr.mxu0 0.0
    %286 = vmatpush1.msra.mxu0 0.0
    %287 = vmatprep.subr.mxu0 0.0
    %288 = vmatpush1.msra.mxu0 0.0
    %289 = vmatprep.subr.mxu0 0.0
    %290 = vmatpush1.msra.mxu0 0.0
    %291 = vmatprep.subr.mxu0 0.0
    %292 = vmatpush1.msra.mxu0 0.0
    %293 = vmatprep.subr.mxu0 0.0
    %294 = vmatpush1.msra.mxu0 0.0
    %295 = vmatprep.subr.mxu0 0.0
    %296 = vmatpush1.msra.mxu0 0.0
    %297 = vmatprep.subr.mxu0 0.0
    %298 = vmatpush1.msra.mxu0 0.0
    %299 = vmatprep.subr.mxu0 0.0
    %300 = vmatpush1.msra.mxu0 0.0
    %301 = vmatprep.subr.mxu0 0.0
    %302 = vmatpush1.msra.mxu0 0.0
    %303 = vmatprep.subr.mxu0 0.0
    %304 = vmatpush1.msra.mxu0 0.0
    %305 = vmatprep.subr.mxu0 0.0
    %306 = vmatpush1.msra.mxu0 0.0
    %307 = vmatprep.subr.mxu0 0.0
    %308 = vmatpush1.msra.mxu0 0.0
    %309 = vmatprep.subr.mxu0 0.0
    %310 = vmatpush1.msra.mxu0 0.0
    %311 = vmatprep.subr.mxu0 0.0
    %312 = vmatpush1.msra.mxu0 0.0
    %313 = vmatprep.subr.mxu0 0.0
    %314 = vmatpush1.msra.mxu0 0.0
    %315 = vmatprep.subr.mxu0 0.0
    %316 = vmatpush1.msra.mxu0 0.0
    %317 = vmatprep.subr.mxu0 0.0
    %318 = vmatpush1.msra.mxu0 0.0
    %319 = vmatprep.subr.mxu0 0.0
    %320 = vmatpush1.msra.mxu0 0.0
    %321 = vmatprep.subr.mxu0 0.0
    %322 = vmatpush1.msra.mxu0 0.0
    %323 = vmatprep.subr.mxu0 0.0
    %324 = vmatpush1.msra.mxu0 0.0
    %325 = vmatprep.subr.mxu0 0.0
    %326 = vmatpush1.msra.mxu0 0.0
    %327 = vmatprep.subr.mxu0 0.0
    %328 = vmatpush1.msra.mxu0 0.0
    %329 = vmatprep.mubr.f32.mxu0 0.0
    %330 = vmatmul.mubr.f32.gmra.mrb[0].mxu0 %v260
    %v331 = vpop.f32.mrb[0].mxu0
    %v332 = vadd.f32 %v256, %v331
    %v333 = vpop.f32.mrb[0].mxu0
    %334 = vmatprep.mubr.f32.mxu0 0.0
    %335 = vmatmul.mubr.f32.gmra.mrb[0].mxu0 %v263
    %v336 = vpop.f32.mrb[0].mxu0
    %v337 = vadd.f32 %v256, %v336
    %v338 = vpop.f32.mrb[0].mxu0
    %339 = vdwg.mxu0
    %vm340 = vcmask 39944
    %v341 = vsel %vm340, %v332, -inf
    %342 = vmax.xlane.f32.xlu0 %v341
    %v343 = vpop.xlane.xlu0 %342
    %v344 = vsel %vm340, %v337, -inf
    %345 = vmax.xlane.f32.xlu0 %v344
    %v346 = vpop.xlane.xlu0 %345
    %v347 = vsub.f32 %v332, %v343
    %v348 = vsub.f32 %v337, %v346
    %v349 = vmul.f32 %v347, 1.442695
    %v350 = vpow.pop %v349
    %v351 = vmul.f32 %v348, 1.442695
    %v352 = vpow.pop %v351
    %355 = vrot.lane.b32.xlu0 %v350, 127
    %v356 = vpop.permute.xlu0 %355
    %357 = vrot.lane.b32.xlu0 %v352, 127
    %v358 = vpop.permute.xlu0 %357
    %vm361 = vcmask 31744
    %v362 = vsel %vm361, %v356, 0.0
    %363 = vadd.xlane.f32.xlu0 %v362
    %v364 = vpop.xlane.xlu0 %363
    %v365 = vsel %vm361, %v358, 0.0
    %366 = vadd.xlane.f32.xlu0 %v365
    %v367 = vpop.xlane.xlu0 %366
    %v368 = vrcp.pop %v364
    %v369 = vrcp.pop %v367
    %v370 = vmul.f32 %v350, %v368
    %v371 = vmul.f32 %v352, %v369
    %vm372 = vcmask 7168
    %v373 = vsel %vm372, %v332, %v370
    %v374 = vsel %vm372, %v337, %v371
    %vm375 = vcmask 39936
    %376 = vst.msk [vmem:[%s7] sm:$0xff] %vm375, %v373
    %377 = vst.msk [vmem:[%s7 + $0x8] sm:$0xff] %vm375, %v374
    // Predicated region
    $region34: #{tpu_custom_call.1} parent=1 // pred_check
      _
    $region35: #{tpu_custom_call.1} parent=1 // pred_check_branch
      %379 = sbr.rel (0) target = $region37
    $region36: #{tpu_custom_call.1} parent=1 // pred_region
      _
    $region37: #{tpu_custom_call.1} parent=1 // pred_fallthru
      _
    // Predicated region
    $region38: #{tpu_custom_call.1} parent=1 // pred_check
      _
    $region39: #{tpu_custom_call.1} parent=1 // pred_check_branch
      %381 = sbr.rel (0) target = $region41
    $region40: #{tpu_custom_call.1} parent=1 // pred_region
      _
    $region41: #{tpu_custom_call.1} parent=1 // pred_fallthru
      _
    %382 = vsyncpa [#allocation3], 1

</llo_original>
